<compile_context>
chip_gen: v5e
topology: v5e:2x2
jax: 0.10.0
libtpu: 0.0.40
codegen_flags: <defaults>
</compile_context>

<pallas_src>
import jax
import jax.numpy as jnp
from jax.experimental import pallas as pl
from jax.experimental.pallas import tpu as pltpu

D_IN = 1025
D_HID = 128
NEG_SLOPE = 0.01   # nn.LeakyReLU default
EPS = 1e-6         # matches nn.LayerNorm(..., eps=1e-06) in Task_SP


def _round_up(n, m):
    return ((n + m - 1) // m) * m


def _layer_norm(x, gamma, beta):
    # PyTorch LayerNorm: biased variance, eps inside the sqrt.
    mean = jnp.mean(x, axis=-1, keepdims=True)
    var = jnp.mean(jnp.square(x - mean), axis=-1, keepdims=True)
    xn = (x - mean) * jax.lax.rsqrt(var + EPS)
    return xn * gamma + beta


def _leaky_relu(x):
    return jnp.where(x > 0, x, NEG_SLOPE * x)


def task_sp_kernel(x_ref,
                   g1_ref, be1_ref, w1_ref, b1_ref,
                   g2_ref, be2_ref, w2_ref, b2_ref,
                   g3_ref, be3_ref,
                   o_ref):
    x = x_ref[...]                                        # (TB, 1025) f32

    # ---- input_block ----
    h = _layer_norm(x, g1_ref[...], be1_ref[...])         # LN(1025)
    # bf16 operands into the MXU, f32 accumulation (W1 is already bf16).
    h = jnp.dot(h.astype(jnp.bfloat16), w1_ref[...],
                preferred_element_type=jnp.float32) + b1_ref[...]   # 1025 -> 128
    h = _leaky_relu(h)

    # ---- hidden_block ----
    h = _layer_norm(h, g2_ref[...], be2_ref[...])         # LN(128)
    # Dropout(0.2) is identity in eval/inference mode (no RNG needed).
    h = jnp.dot(h.astype(jnp.bfloat16), w2_ref[...],
                preferred_element_type=jnp.float32) + b2_ref[...]   # 128 -> 128
    h = _leaky_relu(h)
    h = _layer_norm(h, g3_ref[...], be3_ref[...])         # LN(128)

    o_ref[...] = h.astype(o_ref.dtype)


def task_sp_forward(x, params, tile_b=512):
    """x: (B, 1025) f32 protein embeddings. Returns (B, 128) f32."""
    B, D = x.shape
    assert D == D_IN, f"expected feature dim {D_IN}, got {D}"
    g1, be1, w1, b1, g2, be2, w2, b2, g3, be3 = params

    # Cast GEMM weights to bf16 once outside the kernel (halves their DMA too).
    w1 = w1.astype(jnp.bfloat16)
    w2 = w2.astype(jnp.bfloat16)

    # Batch tile: multiple of 8 (sublane), clamped to the (rounded-up) batch.
    tile_b = max(8, _round_up(min(tile_b, B), 8))
    num_tiles = pl.cdiv(B, tile_b)
    Bp = num_tiles * tile_b
    if Bp != B:
        # Zero-pad ragged final tile (LN of a zero row is finite; rows sliced off).
        x = jnp.pad(x, ((0, Bp - B), (0, 0)))

    def inv_spec(shape):
        # Invariant operand: constant block index -> DMA'd once, reused per step.
        return pl.BlockSpec(shape, lambda i: (0, 0))

    flops = 2 * Bp * (D_IN * D_HID + D_HID * D_HID)
    bytes_accessed = (
        Bp * D_IN * 4                      # x (f32)
        + Bp * D_HID * 4                   # output (f32)
        + D_IN * D_HID * 2                 # W1 (bf16)
        + D_HID * D_HID * 2                # W2 (bf16)
        + (2 * D_IN + 7 * D_HID) * 4       # LN params + biases (f32)
    )

    out = pl.pallas_call(
        task_sp_kernel,
        out_shape=jax.ShapeDtypeStruct((Bp, D_HID), jnp.float32),
        grid_spec=pltpu.PrefetchScalarGridSpec(
            num_scalar_prefetch=0,
            grid=(num_tiles,),
            in_specs=[
                pl.BlockSpec((tile_b, D_IN), lambda i: (i, 0)),   # x tile
                inv_spec((1, D_IN)),        # LN1 gamma
                inv_spec((1, D_IN)),        # LN1 beta
                inv_spec((D_IN, D_HID)),    # W1 (bf16)
                inv_spec((1, D_HID)),       # b1
                inv_spec((1, D_HID)),       # LN2 gamma
                inv_spec((1, D_HID)),       # LN2 beta
                inv_spec((D_HID, D_HID)),   # W2 (bf16)
                inv_spec((1, D_HID)),       # b2
                inv_spec((1, D_HID)),       # LN3 gamma
                inv_spec((1, D_HID)),       # LN3 beta
            ],
            out_specs=pl.BlockSpec((tile_b, D_HID), lambda i: (i, 0)),
        ),
        compiler_params=pltpu.CompilerParams(
            dimension_semantics=("parallel",)),
        cost_estimate=pl.CostEstimate(
            flops=flops, transcendentals=3 * Bp, bytes_accessed=bytes_accessed),
    )(x, g1, be1, w1, b1, g2, be2, w2, b2, g3, be3)

    return out[:B]


def task_sp_reference(x, params):
    # Pure-JAX f32 reference (matches the PyTorch module semantics at eval time).
    (g1, be1, w1, b1, g2, be2, w2, b2, g3, be3) = params
    h = _layer_norm(x, g1, be1)
    h = _leaky_relu(h @ w1 + b1)
    h = _layer_norm(h, g2, be2)
    h = _leaky_relu(h @ w2 + b2)
    return _layer_norm(h, g3, be3)


def init_params(key):
    ks = jax.random.split(key, 4)
    # LayerNorm params initialized as in PyTorch (gamma=1, beta=0).
    g1 = jnp.ones((1, D_IN), jnp.float32)
    be1 = jnp.zeros((1, D_IN), jnp.float32)
    # Linear weights: deterministic small random values (synthetic, no checkpoint).
    w1 = jax.random.normal(ks[0], (D_IN, D_HID), jnp.float32) * 0.02
    b1 = jax.random.normal(ks[1], (1, D_HID), jnp.float32) * 0.02
    g2 = jnp.ones((1, D_HID), jnp.float32)
    be2 = jnp.zeros((1, D_HID), jnp.float32)
    w2 = jax.random.normal(ks[2], (D_HID, D_HID), jnp.float32) * 0.05
    b2 = jax.random.normal(ks[3], (1, D_HID), jnp.float32) * 0.05
    g3 = jnp.ones((1, D_HID), jnp.float32)
    be3 = jnp.zeros((1, D_HID), jnp.float32)
    return (g1, be1, w1, b1, g2, be2, w2, b2, g3, be3)


if __name__ == "__main__":
    key = jax.random.PRNGKey(0)
    k_x1, k_x2, k_p = jax.random.split(key, 3)
    params = init_params(k_p)

    # Tolerances loosened because GEMMs use bf16 operands (f32 accumulation).
    ATOL = RTOL = 5e-2

    # Case 1: small batch (single grid step, tile clamped to batch).
    B1 = 16
    x1 = jax.random.normal(k_x1, (B1, D_IN), jnp.float32)
    out1 = jax.block_until_ready(task_sp_forward(x1, params))
    ref1 = task_sp_reference(x1, params)
    assert out1.shape == (B1, D_HID)
    assert jnp.allclose(out1, ref1, atol=ATOL, rtol=RTOL), "mismatch (small batch)"

    # Case 2: ragged batch exercising the multi-step grid + zero-padding path.
    B2 = 20
    x2 = jax.random.normal(k_x2, (B2, D_IN), jnp.float32)
    out2 = jax.block_until_ready(task_sp_forward(x2, params, tile_b=8))
    ref2 = task_sp_reference(x2, params)
    assert out2.shape == (B2, D_HID)
    assert jnp.allclose(out2, ref2, atol=ATOL, rtol=RTOL), "mismatch (ragged batch)"

    print("KERNEL_OK")
</pallas_src>

<mosaic_0001>
module attributes {stable_mosaic.version = 11 : i64} {
  func.func @task_sp_kernel(%arg0: i32, %arg1: memref<16x1025xf32, #tpu.memory_space<vmem>>, %arg2: memref<1x1025xf32, #tpu.memory_space<vmem>>, %arg3: memref<1x1025xf32, #tpu.memory_space<vmem>>, %arg4: memref<1025x128xbf16, #tpu.memory_space<vmem>>, %arg5: memref<1x128xf32, #tpu.memory_space<vmem>>, %arg6: memref<1x128xf32, #tpu.memory_space<vmem>>, %arg7: memref<1x128xf32, #tpu.memory_space<vmem>>, %arg8: memref<128x128xbf16, #tpu.memory_space<vmem>>, %arg9: memref<1x128xf32, #tpu.memory_space<vmem>>, %arg10: memref<1x128xf32, #tpu.memory_space<vmem>>, %arg11: memref<1x128xf32, #tpu.memory_space<vmem>>, %arg12: memref<16x128xf32, #tpu.memory_space<vmem>>) attributes {dimension_semantics = [#tpu.dimension_semantics<parallel>], iteration_bounds = array<i64: 1>, scalar_prefetch = 0 : i64, scratch_operands = 0 : i64, tpu.core_type = #tpu.core_type<tc>, window_params = [{transform_indices = @transform_0, window_bounds = array<i64: 16, 1025>}, {pipeline_mode = #tpu.pipeline_mode<synchronous>, transform_indices = @transform_1, window_bounds = array<i64: 1, 1025>}, {pipeline_mode = #tpu.pipeline_mode<synchronous>, transform_indices = @transform_2, window_bounds = array<i64: 1, 1025>}, {pipeline_mode = #tpu.pipeline_mode<synchronous>, transform_indices = @transform_3, window_bounds = array<i64: 1025, 128>}, {pipeline_mode = #tpu.pipeline_mode<synchronous>, transform_indices = @transform_4, window_bounds = array<i64: 1, 128>}, {pipeline_mode = #tpu.pipeline_mode<synchronous>, transform_indices = @transform_5, window_bounds = array<i64: 1, 128>}, {pipeline_mode = #tpu.pipeline_mode<synchronous>, transform_indices = @transform_6, window_bounds = array<i64: 1, 128>}, {pipeline_mode = #tpu.pipeline_mode<synchronous>, transform_indices = @transform_7, window_bounds = array<i64: 128, 128>}, {pipeline_mode = #tpu.pipeline_mode<synchronous>, transform_indices = @transform_8, window_bounds = array<i64: 1, 128>}, {pipeline_mode = #tpu.pipeline_mode<synchronous>, transform_indices = @transform_9, window_bounds = array<i64: 1, 128>}, {pipeline_mode = #tpu.pipeline_mode<synchronous>, transform_indices = @transform_10, window_bounds = array<i64: 1, 128>}, {transform_indices = @transform_11, window_bounds = array<i64: 16, 128>}]} {
    %c0 = arith.constant 0 : index
    %c0_0 = arith.constant 0 : index
    %0 = vector.load %arg1[%c0, %c0_0] : memref<16x1025xf32, #tpu.memory_space<vmem>>, vector<16x1025xf32>
    %c0_1 = arith.constant 0 : index
    %c0_2 = arith.constant 0 : index
    %1 = vector.load %arg2[%c0_1, %c0_2] : memref<1x1025xf32, #tpu.memory_space<vmem>>, vector<1x1025xf32>
    %c0_3 = arith.constant 0 : index
    %c0_4 = arith.constant 0 : index
    %2 = vector.load %arg3[%c0_3, %c0_4] : memref<1x1025xf32, #tpu.memory_space<vmem>>, vector<1x1025xf32>
    %cst = arith.constant dense<0.000000e+00> : vector<16xf32>
    %3 = vector.multi_reduction <add>, %0, %cst [1] : vector<16x1025xf32> to vector<16xf32>
    %4 = vector.shape_cast %3 : vector<16xf32> to vector<16x1xf32>
    %cst_5 = arith.constant 1.025000e+03 : f32
    %5 = vector.broadcast %cst_5 : f32 to vector<16x1xf32>
    %6 = arith.divf %4, %5 : vector<16x1xf32>
    %7 = vector.broadcast %6 : vector<16x1xf32> to vector<16x1025xf32>
    %8 = arith.subf %0, %7 : vector<16x1025xf32>
    %9 = arith.mulf %8, %8 : vector<16x1025xf32>
    %cst_6 = arith.constant dense<0.000000e+00> : vector<16xf32>
    %10 = vector.multi_reduction <add>, %9, %cst_6 [1] : vector<16x1025xf32> to vector<16xf32>
    %11 = vector.shape_cast %10 : vector<16xf32> to vector<16x1xf32>
    %cst_7 = arith.constant 1.025000e+03 : f32
    %12 = vector.broadcast %cst_7 : f32 to vector<16x1xf32>
    %13 = arith.divf %11, %12 : vector<16x1xf32>
    %14 = vector.broadcast %6 : vector<16x1xf32> to vector<16x1025xf32>
    %15 = arith.subf %0, %14 : vector<16x1025xf32>
    %cst_8 = arith.constant 9.99999997E-7 : f32
    %16 = vector.broadcast %cst_8 : f32 to vector<16x1xf32>
    %17 = arith.addf %13, %16 : vector<16x1xf32>
    %18 = math.rsqrt %17 : vector<16x1xf32>
    %19 = vector.broadcast %18 : vector<16x1xf32> to vector<16x1025xf32>
    %20 = arith.mulf %15, %19 : vector<16x1025xf32>
    %21 = vector.broadcast %1 : vector<1x1025xf32> to vector<16x1025xf32>
    %22 = arith.mulf %20, %21 : vector<16x1025xf32>
    %23 = vector.broadcast %2 : vector<1x1025xf32> to vector<16x1025xf32>
    %24 = arith.addf %22, %23 : vector<16x1025xf32>
    %25 = arith.truncf %24 : vector<16x1025xf32> to vector<16x1025xbf16>
    %c0_9 = arith.constant 0 : index
    %c0_10 = arith.constant 0 : index
    %26 = vector.load %arg4[%c0_9, %c0_10] : memref<1025x128xbf16, #tpu.memory_space<vmem>>, vector<1025x128xbf16>
    %cst_11 = arith.constant dense<0.000000e+00> : vector<16x128xf32>
    %27 = tpu.matmul %25, %26, %cst_11 {dimension_numbers = #tpu.dot_dimension_numbers<[1], [0], [0], [1], [0, 0, 1, 1], [], []>} : vector<16x1025xbf16>, vector<1025x128xbf16>, vector<16x128xf32> -> vector<16x128xf32>
    %c0_12 = arith.constant 0 : index
    %c0_13 = arith.constant 0 : index
    %28 = vector.load %arg5[%c0_12, %c0_13] : memref<1x128xf32, #tpu.memory_space<vmem>>, vector<1x128xf32>
    %29 = vector.broadcast %28 : vector<1x128xf32> to vector<16x128xf32>
    %30 = arith.addf %27, %29 : vector<16x128xf32>
    %cst_14 = arith.constant 0.000000e+00 : f32
    %31 = vector.broadcast %cst_14 : f32 to vector<16x128xf32>
    %32 = arith.cmpf ogt, %30, %31 : vector<16x128xf32>
    %cst_15 = arith.constant 0.00999999977 : f32
    %33 = vector.broadcast %cst_15 : f32 to vector<16x128xf32>
    %34 = arith.mulf %33, %30 : vector<16x128xf32>
    %35 = arith.select %32, %30, %34 : vector<16x128xi1>, vector<16x128xf32>
    %c0_16 = arith.constant 0 : index
    %c0_17 = arith.constant 0 : index
    %36 = vector.load %arg6[%c0_16, %c0_17] : memref<1x128xf32, #tpu.memory_space<vmem>>, vector<1x128xf32>
    %c0_18 = arith.constant 0 : index
    %c0_19 = arith.constant 0 : index
    %37 = vector.load %arg7[%c0_18, %c0_19] : memref<1x128xf32, #tpu.memory_space<vmem>>, vector<1x128xf32>
    %cst_20 = arith.constant dense<0.000000e+00> : vector<16xf32>
    %38 = vector.multi_reduction <add>, %35, %cst_20 [1] : vector<16x128xf32> to vector<16xf32>
    %39 = vector.shape_cast %38 : vector<16xf32> to vector<16x1xf32>
    %cst_21 = arith.constant 1.280000e+02 : f32
    %40 = vector.broadcast %cst_21 : f32 to vector<16x1xf32>
    %41 = arith.divf %39, %40 : vector<16x1xf32>
    %42 = vector.broadcast %41 : vector<16x1xf32> to vector<16x128xf32>
    %43 = arith.subf %35, %42 : vector<16x128xf32>
    %44 = arith.mulf %43, %43 : vector<16x128xf32>
    %cst_22 = arith.constant dense<0.000000e+00> : vector<16xf32>
    %45 = vector.multi_reduction <add>, %44, %cst_22 [1] : vector<16x128xf32> to vector<16xf32>
    %46 = vector.shape_cast %45 : vector<16xf32> to vector<16x1xf32>
    %cst_23 = arith.constant 1.280000e+02 : f32
    %47 = vector.broadcast %cst_23 : f32 to vector<16x1xf32>
    %48 = arith.divf %46, %47 : vector<16x1xf32>
    %49 = vector.broadcast %41 : vector<16x1xf32> to vector<16x128xf32>
    %50 = arith.subf %35, %49 : vector<16x128xf32>
    %cst_24 = arith.constant 9.99999997E-7 : f32
    %51 = vector.broadcast %cst_24 : f32 to vector<16x1xf32>
    %52 = arith.addf %48, %51 : vector<16x1xf32>
    %53 = math.rsqrt %52 : vector<16x1xf32>
    %54 = vector.broadcast %53 : vector<16x1xf32> to vector<16x128xf32>
    %55 = arith.mulf %50, %54 : vector<16x128xf32>
    %56 = vector.broadcast %36 : vector<1x128xf32> to vector<16x128xf32>
    %57 = arith.mulf %55, %56 : vector<16x128xf32>
    %58 = vector.broadcast %37 : vector<1x128xf32> to vector<16x128xf32>
    %59 = arith.addf %57, %58 : vector<16x128xf32>
    %60 = arith.truncf %59 : vector<16x128xf32> to vector<16x128xbf16>
    %c0_25 = arith.constant 0 : index
    %c0_26 = arith.constant 0 : index
    %61 = vector.load %arg8[%c0_25, %c0_26] : memref<128x128xbf16, #tpu.memory_space<vmem>>, vector<128x128xbf16>
    %cst_27 = arith.constant dense<0.000000e+00> : vector<16x128xf32>
    %62 = tpu.matmul %60, %61, %cst_27 {dimension_numbers = #tpu.dot_dimension_numbers<[1], [0], [0], [1], [0, 0, 1, 1], [], []>} : vector<16x128xbf16>, vector<128x128xbf16>, vector<16x128xf32> -> vector<16x128xf32>
    %c0_28 = arith.constant 0 : index
    %c0_29 = arith.constant 0 : index
    %63 = vector.load %arg9[%c0_28, %c0_29] : memref<1x128xf32, #tpu.memory_space<vmem>>, vector<1x128xf32>
    %64 = vector.broadcast %63 : vector<1x128xf32> to vector<16x128xf32>
    %65 = arith.addf %62, %64 : vector<16x128xf32>
    %cst_30 = arith.constant 0.000000e+00 : f32
    %66 = vector.broadcast %cst_30 : f32 to vector<16x128xf32>
    %67 = arith.cmpf ogt, %65, %66 : vector<16x128xf32>
    %cst_31 = arith.constant 0.00999999977 : f32
    %68 = vector.broadcast %cst_31 : f32 to vector<16x128xf32>
    %69 = arith.mulf %68, %65 : vector<16x128xf32>
    %70 = arith.select %67, %65, %69 : vector<16x128xi1>, vector<16x128xf32>
    %c0_32 = arith.constant 0 : index
    %c0_33 = arith.constant 0 : index
    %71 = vector.load %arg10[%c0_32, %c0_33] : memref<1x128xf32, #tpu.memory_space<vmem>>, vector<1x128xf32>
    %c0_34 = arith.constant 0 : index
    %c0_35 = arith.constant 0 : index
    %72 = vector.load %arg11[%c0_34, %c0_35] : memref<1x128xf32, #tpu.memory_space<vmem>>, vector<1x128xf32>
    %cst_36 = arith.constant dense<0.000000e+00> : vector<16xf32>
    %73 = vector.multi_reduction <add>, %70, %cst_36 [1] : vector<16x128xf32> to vector<16xf32>
    %74 = vector.shape_cast %73 : vector<16xf32> to vector<16x1xf32>
    %cst_37 = arith.constant 1.280000e+02 : f32
    %75 = vector.broadcast %cst_37 : f32 to vector<16x1xf32>
    %76 = arith.divf %74, %75 : vector<16x1xf32>
    %77 = vector.broadcast %76 : vector<16x1xf32> to vector<16x128xf32>
    %78 = arith.subf %70, %77 : vector<16x128xf32>
    %79 = arith.mulf %78, %78 : vector<16x128xf32>
    %cst_38 = arith.constant dense<0.000000e+00> : vector<16xf32>
    %80 = vector.multi_reduction <add>, %79, %cst_38 [1] : vector<16x128xf32> to vector<16xf32>
    %81 = vector.shape_cast %80 : vector<16xf32> to vector<16x1xf32>
    %cst_39 = arith.constant 1.280000e+02 : f32
    %82 = vector.broadcast %cst_39 : f32 to vector<16x1xf32>
    %83 = arith.divf %81, %82 : vector<16x1xf32>
    %84 = vector.broadcast %76 : vector<16x1xf32> to vector<16x128xf32>
    %85 = arith.subf %70, %84 : vector<16x128xf32>
    %cst_40 = arith.constant 9.99999997E-7 : f32
    %86 = vector.broadcast %cst_40 : f32 to vector<16x1xf32>
    %87 = arith.addf %83, %86 : vector<16x1xf32>
    %88 = math.rsqrt %87 : vector<16x1xf32>
    %89 = vector.broadcast %88 : vector<16x1xf32> to vector<16x128xf32>
    %90 = arith.mulf %85, %89 : vector<16x128xf32>
    %91 = vector.broadcast %71 : vector<1x128xf32> to vector<16x128xf32>
    %92 = arith.mulf %90, %91 : vector<16x128xf32>
    %93 = vector.broadcast %72 : vector<1x128xf32> to vector<16x128xf32>
    %94 = arith.addf %92, %93 : vector<16x128xf32>
    %c0_41 = arith.constant 0 : index
    %c0_42 = arith.constant 0 : index
    %95 = vector.load %arg12[%c0_41, %c0_42] : memref<16x128xf32, #tpu.memory_space<vmem>>, vector<16x128xf32>
    tpu.vector_store %arg12[%c0_41, %c0_42], %94 {strides = array<i32>} : memref<16x128xf32, #tpu.memory_space<vmem>>, vector<16x128xf32>,
    return
  }
  func.func @transform_0(%arg0: i32) -> (i32, i32) {
    %c0_i32 = arith.constant 0 : i32
    %c0_i32_0 = arith.constant 0 : i32
    return %arg0, %c0_i32 : i32, i32
  }
  func.func @transform_1(%arg0: i32) -> (i32, i32) {
    %c0_i32 = arith.constant 0 : i32
    %c0_i32_0 = arith.constant 0 : i32
    %c0_i32_1 = arith.constant 0 : i32
    return %c0_i32, %c0_i32_0 : i32, i32
  }
  func.func @transform_2(%arg0: i32) -> (i32, i32) {
    %c0_i32 = arith.constant 0 : i32
    %c0_i32_0 = arith.constant 0 : i32
    %c0_i32_1 = arith.constant 0 : i32
    return %c0_i32, %c0_i32_0 : i32, i32
  }
  func.func @transform_3(%arg0: i32) -> (i32, i32) {
    %c0_i32 = arith.constant 0 : i32
    %c0_i32_0 = arith.constant 0 : i32
    %c0_i32_1 = arith.constant 0 : i32
    return %c0_i32, %c0_i32_0 : i32, i32
  }
  func.func @transform_4(%arg0: i32) -> (i32, i32) {
    %c0_i32 = arith.constant 0 : i32
    %c0_i32_0 = arith.constant 0 : i32
    %c0_i32_1 = arith.constant 0 : i32
    return %c0_i32, %c0_i32_0 : i32, i32
  }
  func.func @transform_5(%arg0: i32) -> (i32, i32) {
    %c0_i32 = arith.constant 0 : i32
    %c0_i32_0 = arith.constant 0 : i32
    %c0_i32_1 = arith.constant 0 : i32
    return %c0_i32, %c0_i32_0 : i32, i32
  }
  func.func @transform_6(%arg0: i32) -> (i32, i32) {
    %c0_i32 = arith.constant 0 : i32
    %c0_i32_0 = arith.constant 0 : i32
    %c0_i32_1 = arith.constant 0 : i32
    return %c0_i32, %c0_i32_0 : i32, i32
  }
  func.func @transform_7(%arg0: i32) -> (i32, i32) {
    %c0_i32 = arith.constant 0 : i32
    %c0_i32_0 = arith.constant 0 : i32
    %c0_i32_1 = arith.constant 0 : i32
    return %c0_i32, %c0_i32_0 : i32, i32
  }
  func.func @transform_8(%arg0: i32) -> (i32, i32) {
    %c0_i32 = arith.constant 0 : i32
    %c0_i32_0 = arith.constant 0 : i32
    %c0_i32_1 = arith.constant 0 : i32
    return %c0_i32, %c0_i32_0 : i32, i32
  }
  func.func @transform_9(%arg0: i32) -> (i32, i32) {
    %c0_i32 = arith.constant 0 : i32
    %c0_i32_0 = arith.constant 0 : i32
    %c0_i32_1 = arith.constant 0 : i32
    return %c0_i32, %c0_i32_0 : i32, i32
  }
  func.func @transform_10(%arg0: i32) -> (i32, i32) {
    %c0_i32 = arith.constant 0 : i32
    %c0_i32_0 = arith.constant 0 : i32
    %c0_i32_1 = arith.constant 0 : i32
    return %c0_i32, %c0_i32_0 : i32, i32
  }
  func.func @transform_11(%arg0: i32) -> (i32, i32) {
    %c0_i32 = arith.constant 0 : i32
    %c0_i32_0 = arith.constant 0 : i32
    return %arg0, %c0_i32 : i32, i32
  }
}

</mosaic_0001>

<llo_original>
// kernel: tpu_custom_call.1
$region0: #{tpu_custom_call.1}
  #allocation0 [shape = 'u32[]', space=smem, size = 0x4, offset = 0x4, fixed_abs, tag = 'smem constant byte address 0x4 - core index']
  #allocation1 [shape = 'u32[72,128]{1,0:T(1,128)}', space=vmem, size = 0x9000, scoped, tag = 'internal scratch']
  %s0 = inlined_call_operand.hbm [shape: f32[16,1025], index: 0, kind: input, shape index: {}]
  %s1 = inlined_call_operand.hbm [shape: f32[1,1025], index: 1, kind: input, shape index: {}]
  %s2 = inlined_call_operand.hbm [shape: f32[1,1025], index: 2, kind: input, shape index: {}]
  %s3 = inlined_call_operand.hbm [shape: bf16[1025,128], index: 3, kind: input, shape index: {}]
  %s4 = inlined_call_operand.vmem [shape: f32[1,128], index: 4, kind: input, shape index: {}]
  %s5 = inlined_call_operand.vmem [shape: f32[1,128], index: 5, kind: input, shape index: {}]
  %s6 = inlined_call_operand.vmem [shape: f32[1,128], index: 6, kind: input, shape index: {}]
  %s7 = inlined_call_operand.hbm [shape: bf16[128,128], index: 7, kind: input, shape index: {}]
  %s8 = inlined_call_operand.vmem [shape: f32[1,128], index: 8, kind: input, shape index: {}]
  %s9 = inlined_call_operand.vmem [shape: f32[1,128], index: 9, kind: input, shape index: {}]
  %s10 = inlined_call_operand.vmem [shape: f32[1,128], index: 10, kind: input, shape index: {}]
  %s11 = inlined_call_operand.hbm [shape: f32[16,128], index: 11, kind: output, shape index: {}]
  %s12 = sld [smem:[#allocation0]]
  $region74: #{tpu_custom_call.1} parent=0
    _
  %s14 = ssub.s32 1, %s12
  %s15 = scalar_select 0, %s14, %s12
  $region1: #{tpu_custom_call.1} parent=0
    #allocation2 [shape = 'u8[73728]{0}', space=vmem, size = 0x12000, scoped, tag = 'input window, operand 0, single buffered']
    #allocation3 [shape = 's32[1]{0}', space=sflag, size = 0x4, scoped, tag = 'scoped memory for tpu_custom_call.1']
    #allocation4 [shape = 's32[1]{0}', space=sflag, size = 0x4, scoped, tag = 'scoped memory for tpu_custom_call.1']
    #allocation5 [shape = 'u8[4608]{0}', space=vmem, size = 0x1400, scoped, tag = 'input window, operand 1, single buffered']
    #allocation6 [shape = 's32[1]{0}', space=sflag, size = 0x4, scoped, tag = 'scoped memory for tpu_custom_call.1']
    #allocation7 [shape = 'u8[4608]{0}', space=vmem, size = 0x1400, scoped, tag = 'input window, operand 2, single buffered']
    #allocation8 [shape = 'u8[264192]{0}', space=vmem, size = 0x40800, scoped, tag = 'input window, operand 3, single buffered']
    #allocation9 [shape = 's32[1]{0}', space=sflag, size = 0x4, scoped, tag = 'scoped memory for tpu_custom_call.1']
    #allocation10 [shape = 'u8[32768]{0}', space=vmem, size = 0x8000, scoped, tag = 'input window, operand 7, single buffered']
    #allocation11 [shape = 'u8[8192]{0}', space=vmem, size = 0x2000, scoped, tag = 'output window, operand 0, single buffered']
    %16 = vsyncpa [#allocation3], 0
    %17 = vsyncpa [#allocation6], 0
    %18 = vsyncpa [#allocation9], 0
    %19 = vsyncpa [#allocation4], 0
    // Predicated region
    $region2: #{tpu_custom_call.1} parent=1 // pred_check
      _
    $region3: #{tpu_custom_call.1} parent=1 // pred_check_branch
      %21 = sbr.rel (0) target = $region5
    $region4: #{tpu_custom_call.1} parent=1 // pred_region
      %23 = vsyncadd [#allocation3], 0
      %s24 = sshll.u32 %s0, 4
      %s25 = int_to_ptr.hbm [resolvable:$true] %s24
      %s26 = sshll.u32 [#allocation2], 4
      %s27 = int_to_ptr.vmem [resolvable:$true] %s26
      %32 = dma.hbm_to_vmem [thread:$0]  %s25, 2304, %s27, [#allocation3], 1152, 1152, 72
    $region5: #{tpu_custom_call.1} parent=1 // pred_fallthru
      _
    // Predicated region
    $region6: #{tpu_custom_call.1} parent=1 // pred_check
      _
    $region7: #{tpu_custom_call.1} parent=1 // pred_check_branch
      %34 = sbr.rel (0) target = $region9
    $region8: #{tpu_custom_call.1} parent=1 // pred_region
      %36 = vsyncadd [#allocation6], 0
      %s38 = sshll.u32 %s1, 4
      %s39 = int_to_ptr.hbm [resolvable:$true] %s38
      %s40 = sshll.u32 [#allocation5], 4
      %s41 = int_to_ptr.vmem [resolvable:$true] %s40
      %43 = dma.hbm_to_vmem [thread:$0]  %s39, 144, %s41, [#allocation6]
    $region9: #{tpu_custom_call.1} parent=1 // pred_fallthru
      _
    // Predicated region
    $region10: #{tpu_custom_call.1} parent=1 // pred_check
      _
    $region11: #{tpu_custom_call.1} parent=1 // pred_check_branch
      %45 = sbr.rel (0) target = $region13
    $region12: #{tpu_custom_call.1} parent=1 // pred_region
      %47 = vsyncadd [#allocation6], 0
      %s49 = sshll.u32 %s2, 4
      %s50 = int_to_ptr.hbm [resolvable:$true] %s49
      %s51 = sshll.u32 [#allocation7], 4
      %s52 = int_to_ptr.vmem [resolvable:$true] %s51
      %54 = dma.hbm_to_vmem [thread:$0]  %s50, 144, %s52, [#allocation6]
    $region13: #{tpu_custom_call.1} parent=1 // pred_fallthru
      _
    // Predicated region
    $region14: #{tpu_custom_call.1} parent=1 // pred_check
      _
    $region15: #{tpu_custom_call.1} parent=1 // pred_check_branch
      %56 = sbr.rel (0) target = $region17
    $region16: #{tpu_custom_call.1} parent=1 // pred_region
      %58 = vsyncadd [#allocation9], 0
      %s59 = sshll.u32 %s3, 4
      %s60 = int_to_ptr.hbm [resolvable:$true] %s59
      %s61 = sshll.u32 [#allocation8], 4
      %s62 = int_to_ptr.vmem [resolvable:$true] %s61
      %67 = dma.hbm_to_vmem [thread:$0]  %s60, 8256, %s62, [#allocation9], 64, 64, 4
    $region17: #{tpu_custom_call.1} parent=1 // pred_fallthru
      _
    // Predicated region
    $region18: #{tpu_custom_call.1} parent=1 // pred_check
      _
    $region19: #{tpu_custom_call.1} parent=1 // pred_check_branch
      %69 = sbr.rel (0) target = $region21
    $region20: #{tpu_custom_call.1} parent=1 // pred_region
      _
    $region21: #{tpu_custom_call.1} parent=1 // pred_fallthru
      _
    // Predicated region
    $region22: #{tpu_custom_call.1} parent=1 // pred_check
      _
    $region23: #{tpu_custom_call.1} parent=1 // pred_check_branch
      %71 = sbr.rel (0) target = $region25
    $region24: #{tpu_custom_call.1} parent=1 // pred_region
      _
    $region25: #{tpu_custom_call.1} parent=1 // pred_fallthru
      _
    // Predicated region
    $region26: #{tpu_custom_call.1} parent=1 // pred_check
      _
    $region27: #{tpu_custom_call.1} parent=1 // pred_check_branch
      %73 = sbr.rel (0) target = $region29
    $region28: #{tpu_custom_call.1} parent=1 // pred_region
      _
    $region29: #{tpu_custom_call.1} parent=1 // pred_fallthru
      _
    // Predicated region
    $region30: #{tpu_custom_call.1} parent=1 // pred_check
      _
    $region31: #{tpu_custom_call.1} parent=1 // pred_check_branch
      %75 = sbr.rel (0) target = $region33
    $region32: #{tpu_custom_call.1} parent=1 // pred_region
      %77 = vsyncadd [#allocation9], 0
      %s78 = sshll.u32 %s7, 4
      %s79 = int_to_ptr.hbm [resolvable:$true] %s78
      %s80 = sshll.u32 [#allocation10], 4
      %s81 = int_to_ptr.vmem [resolvable:$true] %s80
      %86 = dma.hbm_to_vmem [thread:$0]  %s79, 1024, %s81, [#allocation9], 64, 64, 4
    $region33: #{tpu_custom_call.1} parent=1 // pred_fallthru
      _
    // Predicated region
    $region34: #{tpu_custom_call.1} parent=1 // pred_check
      _
    $region35: #{tpu_custom_call.1} parent=1 // pred_check_branch
      %88 = sbr.rel (0) target = $region37
    $region36: #{tpu_custom_call.1} parent=1 // pred_region
      _
    $region37: #{tpu_custom_call.1} parent=1 // pred_fallthru
      _
    // Predicated region
    $region38: #{tpu_custom_call.1} parent=1 // pred_check
      _
    $region39: #{tpu_custom_call.1} parent=1 // pred_check_branch
      %90 = sbr.rel (0) target = $region41
    $region40: #{tpu_custom_call.1} parent=1 // pred_region
      _
    $region41: #{tpu_custom_call.1} parent=1 // pred_fallthru
      _
    // Predicated region
    $region42: #{tpu_custom_call.1} parent=1 // pred_check
      _
    $region43: #{tpu_custom_call.1} parent=1 // pred_check_branch
      %92 = sbr.rel (0) target = $region45
    $region44: #{tpu_custom_call.1} parent=1 // pred_region
      _
    $region45: #{tpu_custom_call.1} parent=1 // pred_fallthru
      _
    // Predicated region
    $region46: #{tpu_custom_call.1} parent=1 // pred_check
      _
    $region47: #{tpu_custom_call.1} parent=1 // pred_check_branch
      %94 = sbr.rel (0) target = $region49
    $region48: #{tpu_custom_call.1} parent=1 // pred_region
      %96 = dma.done [#allocation3], 2304
    $region49: #{tpu_custom_call.1} parent=1 // pred_fallthru
      _
    // Predicated region
    $region50: #{tpu_custom_call.1} parent=1 // pred_check
      _
    $region51: #{tpu_custom_call.1} parent=1 // pred_check_branch
      %98 = sbr.rel (0) target = $region53
    $region52: #{tpu_custom_call.1} parent=1 // pred_region
      %100 = dma.done [#allocation6], 144
    $region53: #{tpu_custom_call.1} parent=1 // pred_fallthru
      _
    // Predicated region
    $region54: #{tpu_custom_call.1} parent=1 // pred_check
      _
    $region55: #{tpu_custom_call.1} parent=1 // pred_check_branch
      %102 = sbr.rel (0) target = $region57
    $region56: #{tpu_custom_call.1} parent=1 // pred_region
      %104 = dma.done [#allocation6], 144
    $region57: #{tpu_custom_call.1} parent=1 // pred_fallthru
      _
    // Predicated region
    $region58: #{tpu_custom_call.1} parent=1 // pred_check
      _
    $region59: #{tpu_custom_call.1} parent=1 // pred_check_branch
      %106 = sbr.rel (0) target = $region61
    $region60: #{tpu_custom_call.1} parent=1 // pred_region
      %108 = dma.done [#allocation9], 8256
    $region61: #{tpu_custom_call.1} parent=1 // pred_fallthru
      _
    // Predicated region
    $region62: #{tpu_custom_call.1} parent=1 // pred_check
      _
    $region63: #{tpu_custom_call.1} parent=1 // pred_check_branch
      %110 = sbr.rel (0) target = $region65
    $region64: #{tpu_custom_call.1} parent=1 // pred_region
      %112 = dma.done [#allocation9], 1024
    $region65: #{tpu_custom_call.1} parent=1 // pred_fallthru
      _
    %v114 = vld [vmem:[#allocation2] sm:$0xff]
    %v115 = vld [vmem:[#allocation2 + $0x8] sm:$0xff]
    %v116 = vld [vmem:[#allocation2 + $0x10] sm:$0xff]
    %v117 = vld [vmem:[#allocation2 + $0x18] sm:$0xff]
    %v118 = vld [vmem:[#allocation2 + $0x20] sm:$0xff]
    %v119 = vld [vmem:[#allocation2 + $0x28] sm:$0xff]
    %v120 = vld [vmem:[#allocation2 + $0x30] sm:$0xff]
    %v121 = vld [vmem:[#allocation2 + $0x38] sm:$0xff]
    %v122 = vld [vmem:[#allocation2 + $0x40] sm:$0xff]
    %v123 = vld [vmem:[#allocation2 + $0x48] sm:$0xff]
    %v124 = vld [vmem:[#allocation2 + $0x50] sm:$0xff]
    %v125 = vld [vmem:[#allocation2 + $0x58] sm:$0xff]
    %v126 = vld [vmem:[#allocation2 + $0x60] sm:$0xff]
    %v127 = vld [vmem:[#allocation2 + $0x68] sm:$0xff]
    %v128 = vld [vmem:[#allocation2 + $0x70] sm:$0xff]
    %v129 = vld [vmem:[#allocation2 + $0x78] sm:$0xff]
    %v130 = vld [vmem:[#allocation2 + $0x80] sm:$0xff]
    %v131 = vld [vmem:[#allocation2 + $0x88] sm:$0xff]
    %v132 = vld [vmem:[#allocation5] sm:$0xff]
    %v133 = vld [vmem:[#allocation5 + $0x8] sm:$0x1]
    %v134 = vld [vmem:[#allocation7] sm:$0xff]
    %v135 = vld [vmem:[#allocation7 + $0x8] sm:$0x1]
    %v136 = vadd.f32 %v114, %v115
    %v137 = vadd.f32 %v136, %v116
    %v138 = vadd.f32 %v137, %v117
    %v139 = vadd.f32 %v138, %v118
    %v140 = vadd.f32 %v139, %v119
    %v141 = vadd.f32 %v140, %v120
    %v142 = vadd.f32 %v141, %v121
    %vm143 = vcmask 7168
    %v144 = vsel %vm143, %v122, 0.0
    %v145 = vadd.f32 %v142, %v144
    %146 = vadd.xlane.f32.xlu0 %v145
    %v147 = vpop.xlane.xlu0 %146
    %v148 = vadd.f32 %v123, %v124
    %v149 = vadd.f32 %v148, %v125
    %v150 = vadd.f32 %v149, %v126
    %v151 = vadd.f32 %v150, %v127
    %v152 = vadd.f32 %v151, %v128
    %v153 = vadd.f32 %v152, %v129
    %v154 = vadd.f32 %v153, %v130
    %v155 = vsel %vm143, %v131, 0.0
    %v156 = vadd.f32 %v154, %v155
    %157 = vadd.xlane.f32.xlu0 %v156
    %v158 = vpop.xlane.xlu0 %157
    %v159 = vrcp.pop 1025.0
    %v160 = vmul.f32 1025.0, %v159
    %v161 = vsub.f32 1.0, %v160
    %v162 = vmul.f32 %v159, %v161
    %v163 = vadd.f32 %v159, %v162
    %vm164 = vweird.f32 %v159
    %v165 = vsel %vm164, %v159, %v163
    %v166 = vmul.f32 %v147, %v165
    %v167 = vmul.f32 %v158, %v165
    %v168 = vsub.f32 %v114, %v166
    %v169 = vsub.f32 %v115, %v166
    %v170 = vsub.f32 %v116, %v166
    %v171 = vsub.f32 %v117, %v166
    %v172 = vsub.f32 %v118, %v166
    %v173 = vsub.f32 %v119, %v166
    %v174 = vsub.f32 %v120, %v166
    %v175 = vsub.f32 %v121, %v166
    %v176 = vsub.f32 %v122, %v166
    %v177 = vsub.f32 %v123, %v167
    %v178 = vsub.f32 %v124, %v167
    %v179 = vsub.f32 %v125, %v167
    %v180 = vsub.f32 %v126, %v167
    %v181 = vsub.f32 %v127, %v167
    %v182 = vsub.f32 %v128, %v167
    %v183 = vsub.f32 %v129, %v167
    %v184 = vsub.f32 %v130, %v167
    %v185 = vsub.f32 %v131, %v167
    %v186 = vmul.f32 %v168, %v168
    %v187 = vmul.f32 %v169, %v169
    %v188 = vmul.f32 %v170, %v170
    %v189 = vmul.f32 %v171, %v171
    %v190 = vmul.f32 %v172, %v172
    %v191 = vmul.f32 %v173, %v173
    %v192 = vmul.f32 %v174, %v174
    %v193 = vmul.f32 %v175, %v175
    %v194 = vmul.f32 %v176, %v176
    %v195 = vmul.f32 %v177, %v177
    %v196 = vmul.f32 %v178, %v178
    %v197 = vmul.f32 %v179, %v179
    %v198 = vmul.f32 %v180, %v180
    %v199 = vmul.f32 %v181, %v181
    %v200 = vmul.f32 %v182, %v182
    %v201 = vmul.f32 %v183, %v183
    %v202 = vmul.f32 %v184, %v184
    %v203 = vmul.f32 %v185, %v185
    %v204 = vadd.f32 %v186, %v187
    %v205 = vadd.f32 %v204, %v188
    %v206 = vadd.f32 %v205, %v189
    %v207 = vadd.f32 %v206, %v190
    %v208 = vadd.f32 %v207, %v191
    %v209 = vadd.f32 %v208, %v192
    %v210 = vadd.f32 %v209, %v193
    %v211 = vsel %vm143, %v194, 0.0
    %v212 = vadd.f32 %v210, %v211
    %213 = vadd.xlane.f32.xlu0 %v212
    %v214 = vpop.xlane.xlu0 %213
    %v215 = vadd.f32 %v195, %v196
    %v216 = vadd.f32 %v215, %v197
    %v217 = vadd.f32 %v216, %v198
    %v218 = vadd.f32 %v217, %v199
    %v219 = vadd.f32 %v218, %v200
    %v220 = vadd.f32 %v219, %v201
    %v221 = vadd.f32 %v220, %v202
    %v222 = vsel %vm143, %v203, 0.0
    %v223 = vadd.f32 %v221, %v222
    %224 = vadd.xlane.f32.xlu0 %v223
    %v225 = vpop.xlane.xlu0 %224
    %v226 = vmul.f32 %v214, %v165
    %v227 = vmul.f32 %v225, %v165
    %v228 = vadd.f32 %v226, 1e-06
    %v229 = vadd.f32 %v227, 1e-06
    %v230 = vrsqrt.pop %v228
    %v231 = vmul.f32 %v230, %v228
    %v232 = vmul.f32 %v231, %v230
    %v233 = vmul.f32 0.5, %v232
    %v234 = vsub.f32 1.5, %v233
    %v235 = vmul.f32 %v230, %v234
    %vm236 = vweird.f32 %v228
    %vm237 = vweird.f32 %v230
    %vm238 = vmor %vm236, %vm237
    %v239 = vsel %vm238, %v230, %v235
    %v240 = vrsqrt.pop %v229
    %v241 = vmul.f32 %v240, %v229
    %v242 = vmul.f32 %v241, %v240
    %v243 = vmul.f32 0.5, %v242
    %v244 = vsub.f32 1.5, %v243
    %v245 = vmul.f32 %v240, %v244
    %vm246 = vweird.f32 %v229
    %vm247 = vweird.f32 %v240
    %vm248 = vmor %vm246, %vm247
    %v249 = vsel %vm248, %v240, %v245
    %v250 = vmul.f32 %v168, %v239
    %v251 = vmul.f32 %v169, %v239
    %v252 = vmul.f32 %v170, %v239
    %v253 = vmul.f32 %v171, %v239
    %v254 = vmul.f32 %v172, %v239
    %v255 = vmul.f32 %v173, %v239
    %v256 = vmul.f32 %v174, %v239
    %v257 = vmul.f32 %v175, %v239
    %v258 = vmul.f32 %v176, %v239
    %v259 = vmul.f32 %v177, %v249
    %v260 = vmul.f32 %v178, %v249
    %v261 = vmul.f32 %v179, %v249
    %v262 = vmul.f32 %v180, %v249
    %v263 = vmul.f32 %v181, %v249
    %v264 = vmul.f32 %v182, %v249
    %v265 = vmul.f32 %v183, %v249
    %v266 = vmul.f32 %v184, %v249
    %v267 = vmul.f32 %v185, %v249
    %v270 = vperm.slane %v132, 0
    %v271 = vperm.slane %v132, 1
    %v272 = vperm.slane %v132, 2
    %v273 = vperm.slane %v132, 3
    %v274 = vperm.slane %v132, 4
    %v275 = vperm.slane %v132, 5
    %v276 = vperm.slane %v132, 6
    %v277 = vperm.slane %v132, 7
    %v278 = vperm.slane %v133, 0
    %v288 = vmul.f32 %v250, %v270
    %v289 = vmul.f32 %v251, %v271
    %v290 = vmul.f32 %v252, %v272
    %v291 = vmul.f32 %v253, %v273
    %v292 = vmul.f32 %v254, %v274
    %v293 = vmul.f32 %v255, %v275
    %v294 = vmul.f32 %v256, %v276
    %v295 = vmul.f32 %v257, %v277
    %v296 = vmul.f32 %v258, %v278
    %v297 = vmul.f32 %v259, %v270
    %v298 = vmul.f32 %v260, %v271
    %v299 = vmul.f32 %v261, %v272
    %v300 = vmul.f32 %v262, %v273
    %v301 = vmul.f32 %v263, %v274
    %v302 = vmul.f32 %v264, %v275
    %v303 = vmul.f32 %v265, %v276
    %v304 = vmul.f32 %v266, %v277
    %v305 = vmul.f32 %v267, %v278
    %v308 = vperm.slane %v134, 0
    %v309 = vperm.slane %v134, 1
    %v310 = vperm.slane %v134, 2
    %v311 = vperm.slane %v134, 3
    %v312 = vperm.slane %v134, 4
    %v313 = vperm.slane %v134, 5
    %v314 = vperm.slane %v134, 6
    %v315 = vperm.slane %v134, 7
    %v316 = vperm.slane %v135, 0
    %v326 = vadd.f32 %v288, %v308
    %v327 = vadd.f32 %v289, %v309
    %v328 = vadd.f32 %v290, %v310
    %v329 = vadd.f32 %v291, %v311
    %v330 = vadd.f32 %v292, %v312
    %v331 = vadd.f32 %v293, %v313
    %v332 = vadd.f32 %v294, %v314
    %v333 = vadd.f32 %v295, %v315
    %v334 = vadd.f32 %v296, %v316
    %v335 = vadd.f32 %v297, %v308
    %v336 = vadd.f32 %v298, %v309
    %v337 = vadd.f32 %v299, %v310
    %v338 = vadd.f32 %v300, %v311
    %v339 = vadd.f32 %v301, %v312
    %v340 = vadd.f32 %v302, %v313
    %v341 = vadd.f32 %v303, %v314
    %v342 = vadd.f32 %v304, %v315
    %v343 = vadd.f32 %v305, %v316
    %v344 = vpack.c.bf16 %v335, %v326
    %v345 = vpack.c.bf16 %v336, %v327
    %v346 = vpack.c.bf16 %v337, %v328
    %v347 = vpack.c.bf16 %v338, %v329
    %v348 = vpack.c.bf16 %v339, %v330
    %v349 = vpack.c.bf16 %v340, %v331
    %v350 = vpack.c.bf16 %v341, %v332
    %v351 = vpack.c.bf16 %v342, %v333
    %v352 = vpack.c.bf16 %v343, %v334
    %v353 = vld [vmem:[#allocation8] sm:$0xf]
    %v354 = vld [vmem:[#allocation8 + $0x4] sm:$0xf]
    %v355 = vld [vmem:[#allocation8 + $0x8] sm:$0xf]
    %v356 = vld [vmem:[#allocation8 + $0xc] sm:$0xf]
    %v357 = vld [vmem:[#allocation8 + $0x10] sm:$0xf]
    %v358 = vld [vmem:[#allocation8 + $0x14] sm:$0xf]
    %v359 = vld [vmem:[#allocation8 + $0x18] sm:$0xf]
    %v360 = vld [vmem:[#allocation8 + $0x1c] sm:$0xf]
    %v361 = vld [vmem:[#allocation8 + $0x20] sm:$0xf]
    %v362 = vld [vmem:[#allocation8 + $0x24] sm:$0xf]
    %v363 = vld [vmem:[#allocation8 + $0x28] sm:$0xf]
    %v364 = vld [vmem:[#allocation8 + $0x2c] sm:$0xf]
    %v365 = vld [vmem:[#allocation8 + $0x30] sm:$0xf]
    %v366 = vld [vmem:[#allocation8 + $0x34] sm:$0xf]
    %v367 = vld [vmem:[#allocation8 + $0x38] sm:$0xf]
    %v368 = vld [vmem:[#allocation8 + $0x3c] sm:$0xf]
    %v369 = vld [vmem:[#allocation8 + $0x40] sm:$0xf]
    %v370 = vld [vmem:[#allocation8 + $0x44] sm:$0xf]
    %v371 = vld [vmem:[#allocation8 + $0x48] sm:$0xf]
    %v372 = vld [vmem:[#allocation8 + $0x4c] sm:$0xf]
    %v373 = vld [vmem:[#allocation8 + $0x50] sm:$0xf]
    %v374 = vld [vmem:[#allocation8 + $0x54] sm:$0xf]
    %v375 = vld [vmem:[#allocation8 + $0x58] sm:$0xf]
    %v376 = vld [vmem:[#allocation8 + $0x5c] sm:$0xf]
    %v377 = vld [vmem:[#allocation8 + $0x60] sm:$0xf]
    %v378 = vld [vmem:[#allocation8 + $0x64] sm:$0xf]
    %v379 = vld [vmem:[#allocation8 + $0x68] sm:$0xf]
    %v380 = vld [vmem:[#allocation8 + $0x6c] sm:$0xf]
    %v381 = vld [vmem:[#allocation8 + $0x70] sm:$0xf]
    %v382 = vld [vmem:[#allocation8 + $0x74] sm:$0xf]
    %v383 = vld [vmem:[#allocation8 + $0x78] sm:$0xf]
    %v384 = vld [vmem:[#allocation8 + $0x7c] sm:$0xf]
    %v385 = vld [vmem:[#allocation8 + $0x80] sm:$0xf]
    %v386 = vld [vmem:[#allocation8 + $0x84] sm:$0xf]
    %v387 = vld [vmem:[#allocation8 + $0x88] sm:$0xf]
    %v388 = vld [vmem:[#allocation8 + $0x8c] sm:$0xf]
    %v389 = vld [vmem:[#allocation8 + $0x90] sm:$0xf]
    %v390 = vld [vmem:[#allocation8 + $0x94] sm:$0xf]
    %v391 = vld [vmem:[#allocation8 + $0x98] sm:$0xf]
    %v392 = vld [vmem:[#allocation8 + $0x9c] sm:$0xf]
    %v393 = vld [vmem:[#allocation8 + $0xa0] sm:$0xf]
    %v394 = vld [vmem:[#allocation8 + $0xa4] sm:$0xf]
    %v395 = vld [vmem:[#allocation8 + $0xa8] sm:$0xf]
    %v396 = vld [vmem:[#allocation8 + $0xac] sm:$0xf]
    %v397 = vld [vmem:[#allocation8 + $0xb0] sm:$0xf]
    %v398 = vld [vmem:[#allocation8 + $0xb4] sm:$0xf]
    %v399 = vld [vmem:[#allocation8 + $0xb8] sm:$0xf]
    %v400 = vld [vmem:[#allocation8 + $0xbc] sm:$0xf]
    %v401 = vld [vmem:[#allocation8 + $0xc0] sm:$0xf]
    %v402 = vld [vmem:[#allocation8 + $0xc4] sm:$0xf]
    %v403 = vld [vmem:[#allocation8 + $0xc8] sm:$0xf]
    %v404 = vld [vmem:[#allocation8 + $0xcc] sm:$0xf]
    %v405 = vld [vmem:[#allocation8 + $0xd0] sm:$0xf]
    %v406 = vld [vmem:[#allocation8 + $0xd4] sm:$0xf]
    %v407 = vld [vmem:[#allocation8 + $0xd8] sm:$0xf]
    %v408 = vld [vmem:[#allocation8 + $0xdc] sm:$0xf]
    %v409 = vld [vmem:[#allocation8 + $0xe0] sm:$0xf]
    %v410 = vld [vmem:[#allocation8 + $0xe4] sm:$0xf]
    %v411 = vld [vmem:[#allocation8 + $0xe8] sm:$0xf]
    %v412 = vld [vmem:[#allocation8 + $0xec] sm:$0xf]
    %v413 = vld [vmem:[#allocation8 + $0xf0] sm:$0xf]
    %v414 = vld [vmem:[#allocation8 + $0xf4] sm:$0xf]
    %v415 = vld [vmem:[#allocation8 + $0xf8] sm:$0xf]
    %v416 = vld [vmem:[#allocation8 + $0xfc] sm:$0xf]
    %v417 = vld [vmem:[#allocation8 + $0x100] sm:$0xf]
    %v418 = vld [vmem:[#allocation8 + $0x104] sm:$0xf]
    %v419 = vld [vmem:[#allocation8 + $0x108] sm:$0xf]
    %v420 = vld [vmem:[#allocation8 + $0x10c] sm:$0xf]
    %v421 = vld [vmem:[#allocation8 + $0x110] sm:$0xf]
    %v422 = vld [vmem:[#allocation8 + $0x114] sm:$0xf]
    %v423 = vld [vmem:[#allocation8 + $0x118] sm:$0xf]
    %v424 = vld [vmem:[#allocation8 + $0x11c] sm:$0xf]
    %v425 = vld [vmem:[#allocation8 + $0x120] sm:$0xf]
    %v426 = vld [vmem:[#allocation8 + $0x124] sm:$0xf]
    %v427 = vld [vmem:[#allocation8 + $0x128] sm:$0xf]
    %v428 = vld [vmem:[#allocation8 + $0x12c] sm:$0xf]
    %v429 = vld [vmem:[#allocation8 + $0x130] sm:$0xf]
    %v430 = vld [vmem:[#allocation8 + $0x134] sm:$0xf]
    %v431 = vld [vmem:[#allocation8 + $0x138] sm:$0xf]
    %v432 = vld [vmem:[#allocation8 + $0x13c] sm:$0xf]
    %v433 = vld [vmem:[#allocation8 + $0x140] sm:$0xf]
    %v434 = vld [vmem:[#allocation8 + $0x144] sm:$0xf]
    %v435 = vld [vmem:[#allocation8 + $0x148] sm:$0xf]
    %v436 = vld [vmem:[#allocation8 + $0x14c] sm:$0xf]
    %v437 = vld [vmem:[#allocation8 + $0x150] sm:$0xf]
    %v438 = vld [vmem:[#allocation8 + $0x154] sm:$0xf]
    %v439 = vld [vmem:[#allocation8 + $0x158] sm:$0xf]
    %v440 = vld [vmem:[#allocation8 + $0x15c] sm:$0xf]
    %v441 = vld [vmem:[#allocation8 + $0x160] sm:$0xf]
    %v442 = vld [vmem:[#allocation8 + $0x164] sm:$0xf]
    %v443 = vld [vmem:[#allocation8 + $0x168] sm:$0xf]
    %v444 = vld [vmem:[#allocation8 + $0x16c] sm:$0xf]
    %v445 = vld [vmem:[#allocation8 + $0x170] sm:$0xf]
    %v446 = vld [vmem:[#allocation8 + $0x174] sm:$0xf]
    %v447 = vld [vmem:[#allocation8 + $0x178] sm:$0xf]
    %v448 = vld [vmem:[#allocation8 + $0x17c] sm:$0xf]
    %v449 = vld [vmem:[#allocation8 + $0x180] sm:$0xf]
    %v450 = vld [vmem:[#allocation8 + $0x184] sm:$0xf]
    %v451 = vld [vmem:[#allocation8 + $0x188] sm:$0xf]
    %v452 = vld [vmem:[#allocation8 + $0x18c] sm:$0xf]
    %v453 = vld [vmem:[#allocation8 + $0x190] sm:$0xf]
    %v454 = vld [vmem:[#allocation8 + $0x194] sm:$0xf]
    %v455 = vld [vmem:[#allocation8 + $0x198] sm:$0xf]
    %v456 = vld [vmem:[#allocation8 + $0x19c] sm:$0xf]
    %v457 = vld [vmem:[#allocation8 + $0x1a0] sm:$0xf]
    %v458 = vld [vmem:[#allocation8 + $0x1a4] sm:$0xf]
    %v459 = vld [vmem:[#allocation8 + $0x1a8] sm:$0xf]
    %v460 = vld [vmem:[#allocation8 + $0x1ac] sm:$0xf]
    %v461 = vld [vmem:[#allocation8 + $0x1b0] sm:$0xf]
    %v462 = vld [vmem:[#allocation8 + $0x1b4] sm:$0xf]
    %v463 = vld [vmem:[#allocation8 + $0x1b8] sm:$0xf]
    %v464 = vld [vmem:[#allocation8 + $0x1bc] sm:$0xf]
    %v465 = vld [vmem:[#allocation8 + $0x1c0] sm:$0xf]
    %v466 = vld [vmem:[#allocation8 + $0x1c4] sm:$0xf]
    %v467 = vld [vmem:[#allocation8 + $0x1c8] sm:$0xf]
    %v468 = vld [vmem:[#allocation8 + $0x1cc] sm:$0xf]
    %v469 = vld [vmem:[#allocation8 + $0x1d0] sm:$0xf]
    %v470 = vld [vmem:[#allocation8 + $0x1d4] sm:$0xf]
    %v471 = vld [vmem:[#allocation8 + $0x1d8] sm:$0xf]
    %v472 = vld [vmem:[#allocation8 + $0x1dc] sm:$0xf]
    %v473 = vld [vmem:[#allocation8 + $0x1e0] sm:$0xf]
    %v474 = vld [vmem:[#allocation8 + $0x1e4] sm:$0xf]
    %v475 = vld [vmem:[#allocation8 + $0x1e8] sm:$0xf]
    %v476 = vld [vmem:[#allocation8 + $0x1ec] sm:$0xf]
    %v477 = vld [vmem:[#allocation8 + $0x1f0] sm:$0xf]
    %v478 = vld [vmem:[#allocation8 + $0x1f4] sm:$0xf]
    %v479 = vld [vmem:[#allocation8 + $0x1f8] sm:$0xf]
    %v480 = vld [vmem:[#allocation8 + $0x1fc] sm:$0xf]
    %v481 = vld [vmem:[#allocation8 + $0x200] sm:$0x1]
    %v482 = vld [vmem:[%s4] sm:$0x1]
    %v484 = vperm.slane %v482, 0
    %v615 = vunpack.c.l.b16 %v353
    %v616 = vunpack.c.l.b16 %v354
    %v617 = vunpack.c.l.b16 %v355
    %v618 = vunpack.c.l.b16 %v356
    %v619 = vunpack.c.l.b16 %v357
    %v620 = vunpack.c.l.b16 %v358
    %v621 = vunpack.c.l.b16 %v359
    %v622 = vunpack.c.l.b16 %v360
    %v623 = vunpack.c.l.b16 %v361
    %v624 = vunpack.c.l.b16 %v362
    %v625 = vunpack.c.l.b16 %v363
    %v626 = vunpack.c.l.b16 %v364
    %v627 = vunpack.c.l.b16 %v365
    %v628 = vunpack.c.l.b16 %v366
    %v629 = vunpack.c.l.b16 %v367
    %v630 = vunpack.c.l.b16 %v368
    %v631 = vunpack.c.l.b16 %v369
    %v632 = vunpack.c.l.b16 %v370
    %v633 = vunpack.c.l.b16 %v371
    %v634 = vunpack.c.l.b16 %v372
    %v635 = vunpack.c.l.b16 %v373
    %v636 = vunpack.c.l.b16 %v374
    %v637 = vunpack.c.l.b16 %v375
    %v638 = vunpack.c.l.b16 %v376
    %v639 = vunpack.c.l.b16 %v377
    %v640 = vunpack.c.l.b16 %v378
    %v641 = vunpack.c.l.b16 %v379
    %v642 = vunpack.c.l.b16 %v380
    %v643 = vunpack.c.l.b16 %v381
    %v644 = vunpack.c.l.b16 %v382
    %v645 = vunpack.c.l.b16 %v383
    %v646 = vunpack.c.l.b16 %v384
    %v647 = vunpack.c.l.b16 %v385
    %v648 = vunpack.c.l.b16 %v386
    %v649 = vunpack.c.l.b16 %v387
    %v650 = vunpack.c.l.b16 %v388
    %v651 = vunpack.c.l.b16 %v389
    %v652 = vunpack.c.l.b16 %v390
    %v653 = vunpack.c.l.b16 %v391
    %v654 = vunpack.c.l.b16 %v392
    %v655 = vunpack.c.l.b16 %v393
    %v656 = vunpack.c.l.b16 %v394
    %v657 = vunpack.c.l.b16 %v395
    %v658 = vunpack.c.l.b16 %v396
    %v659 = vunpack.c.l.b16 %v397
    %v660 = vunpack.c.l.b16 %v398
    %v661 = vunpack.c.l.b16 %v399
    %v662 = vunpack.c.l.b16 %v400
    %v663 = vunpack.c.l.b16 %v401
    %v664 = vunpack.c.l.b16 %v402
    %v665 = vunpack.c.l.b16 %v403
    %v666 = vunpack.c.l.b16 %v404
    %v667 = vunpack.c.l.b16 %v405
    %v668 = vunpack.c.l.b16 %v406
    %v669 = vunpack.c.l.b16 %v407
    %v670 = vunpack.c.l.b16 %v408
    %v671 = vunpack.c.l.b16 %v409
    %v672 = vunpack.c.l.b16 %v410
    %v673 = vunpack.c.l.b16 %v411
    %v674 = vunpack.c.l.b16 %v412
    %v675 = vunpack.c.l.b16 %v413
    %v676 = vunpack.c.l.b16 %v414
    %v677 = vunpack.c.l.b16 %v415
    %v678 = vunpack.c.l.b16 %v416
    %v679 = vunpack.c.l.b16 %v417
    %v680 = vunpack.c.l.b16 %v418
    %v681 = vunpack.c.l.b16 %v419
    %v682 = vunpack.c.l.b16 %v420
    %v683 = vunpack.c.l.b16 %v421
    %v684 = vunpack.c.l.b16 %v422
    %v685 = vunpack.c.l.b16 %v423
    %v686 = vunpack.c.l.b16 %v424
    %v687 = vunpack.c.l.b16 %v425
    %v688 = vunpack.c.l.b16 %v426
    %v689 = vunpack.c.l.b16 %v427
    %v690 = vunpack.c.l.b16 %v428
    %v691 = vunpack.c.l.b16 %v429
    %v692 = vunpack.c.l.b16 %v430
    %v693 = vunpack.c.l.b16 %v431
    %v694 = vunpack.c.l.b16 %v432
    %v695 = vunpack.c.l.b16 %v433
    %v696 = vunpack.c.l.b16 %v434
    %v697 = vunpack.c.l.b16 %v435
    %v698 = vunpack.c.l.b16 %v436
    %v699 = vunpack.c.l.b16 %v437
    %v700 = vunpack.c.l.b16 %v438
    %v701 = vunpack.c.l.b16 %v439
    %v702 = vunpack.c.l.b16 %v440
    %v703 = vunpack.c.l.b16 %v441
    %v704 = vunpack.c.l.b16 %v442
    %v705 = vunpack.c.l.b16 %v443
    %v706 = vunpack.c.l.b16 %v444
    %v707 = vunpack.c.l.b16 %v445
    %v708 = vunpack.c.l.b16 %v446
    %v709 = vunpack.c.l.b16 %v447
    %v710 = vunpack.c.l.b16 %v448
    %v711 = vunpack.c.l.b16 %v449
    %v712 = vunpack.c.l.b16 %v450
    %v713 = vunpack.c.l.b16 %v451
    %v714 = vunpack.c.l.b16 %v452
    %v715 = vunpack.c.l.b16 %v453
    %v716 = vunpack.c.l.b16 %v454
    %v717 = vunpack.c.l.b16 %v455
    %v718 = vunpack.c.l.b16 %v456
    %v719 = vunpack.c.l.b16 %v457
    %v720 = vunpack.c.l.b16 %v458
    %v721 = vunpack.c.l.b16 %v459
    %v722 = vunpack.c.l.b16 %v460
    %v723 = vunpack.c.l.b16 %v461
    %v724 = vunpack.c.l.b16 %v462
    %v725 = vunpack.c.l.b16 %v463
    %v726 = vunpack.c.l.b16 %v464
    %v727 = vunpack.c.l.b16 %v465
    %v728 = vunpack.c.l.b16 %v466
    %v729 = vunpack.c.l.b16 %v467
    %v730 = vunpack.c.l.b16 %v468
    %v731 = vunpack.c.l.b16 %v469
    %v732 = vunpack.c.l.b16 %v470
    %v733 = vunpack.c.l.b16 %v471
    %v734 = vunpack.c.l.b16 %v472
    %v735 = vunpack.c.l.b16 %v473
    %v736 = vunpack.c.l.b16 %v474
    %v737 = vunpack.c.l.b16 %v475
    %v738 = vunpack.c.l.b16 %v476
    %v739 = vunpack.c.l.b16 %v477
    %v740 = vunpack.c.l.b16 %v478
    %v741 = vunpack.c.l.b16 %v479
    %v742 = vunpack.c.l.b16 %v480
    %v743 = vunpack.c.l.b16 %v481
    %v744 = vpack.c.b16 %v616, %v615
    %v745 = vpack.c.b16 %v618, %v617
    %v746 = vpack.c.b16 %v620, %v619
    %v747 = vpack.c.b16 %v622, %v621
    %v748 = vpack.c.b16 %v624, %v623
    %v749 = vpack.c.b16 %v626, %v625
    %v750 = vpack.c.b16 %v628, %v627
    %v751 = vpack.c.b16 %v630, %v629
    %v752 = vpack.c.b16 %v632, %v631
    %v753 = vpack.c.b16 %v634, %v633
    %v754 = vpack.c.b16 %v636, %v635
    %v755 = vpack.c.b16 %v638, %v637
    %v756 = vpack.c.b16 %v640, %v639
    %v757 = vpack.c.b16 %v642, %v641
    %v758 = vpack.c.b16 %v644, %v643
    %v759 = vpack.c.b16 %v646, %v645
    %v760 = vpack.c.b16 %v648, %v647
    %v761 = vpack.c.b16 %v650, %v649
    %v762 = vpack.c.b16 %v652, %v651
    %v763 = vpack.c.b16 %v654, %v653
    %v764 = vpack.c.b16 %v656, %v655
    %v765 = vpack.c.b16 %v658, %v657
    %v766 = vpack.c.b16 %v660, %v659
    %v767 = vpack.c.b16 %v662, %v661
    %v768 = vpack.c.b16 %v664, %v663
    %v769 = vpack.c.b16 %v666, %v665
    %v770 = vpack.c.b16 %v668, %v667
    %v771 = vpack.c.b16 %v670, %v669
    %v772 = vpack.c.b16 %v672, %v671
    %v773 = vpack.c.b16 %v674, %v673
    %v774 = vpack.c.b16 %v676, %v675
    %v775 = vpack.c.b16 %v678, %v677
    %v776 = vpack.c.b16 %v680, %v679
    %v777 = vpack.c.b16 %v682, %v681
    %v778 = vpack.c.b16 %v684, %v683
    %v779 = vpack.c.b16 %v686, %v685
    %v780 = vpack.c.b16 %v688, %v687
    %v781 = vpack.c.b16 %v690, %v689
    %v782 = vpack.c.b16 %v692, %v691
    %v783 = vpack.c.b16 %v694, %v693
    %v784 = vpack.c.b16 %v696, %v695
    %v785 = vpack.c.b16 %v698, %v697
    %v786 = vpack.c.b16 %v700, %v699
    %v787 = vpack.c.b16 %v702, %v701
    %v788 = vpack.c.b16 %v704, %v703
    %v789 = vpack.c.b16 %v706, %v705
    %v790 = vpack.c.b16 %v708, %v707
    %v791 = vpack.c.b16 %v710, %v709
    %v792 = vpack.c.b16 %v712, %v711
    %v793 = vpack.c.b16 %v714, %v713
    %v794 = vpack.c.b16 %v716, %v715
    %v795 = vpack.c.b16 %v718, %v717
    %v796 = vpack.c.b16 %v720, %v719
    %v797 = vpack.c.b16 %v722, %v721
    %v798 = vpack.c.b16 %v724, %v723
    %v799 = vpack.c.b16 %v726, %v725
    %v800 = vpack.c.b16 %v728, %v727
    %v801 = vpack.c.b16 %v730, %v729
    %v802 = vpack.c.b16 %v732, %v731
    %v803 = vpack.c.b16 %v734, %v733
    %v804 = vpack.c.b16 %v736, %v735
    %v805 = vpack.c.b16 %v738, %v737
    %v806 = vpack.c.b16 %v740, %v739
    %v807 = vpack.c.b16 %v742, %v741
    %v808 = vpack.c.b16 %v743, %v743
    %v874 = vsel %vm143, %v352, 0
    %vm876 = vcmask 1040384
    %v877 = vsel 0, 4294967295, 65535
    %v878 = vsel %vm876, %v877, 0
    %v880 = vand.u32 %v808, %v878
    %882 = vmatpush.bf16.msra.mxu0 %v751
    %883 = vmatpush.bf16.msra.mxu0 %v750
    %884 = vmatpush.bf16.msra.mxu0 %v749
    %885 = vmatpush.bf16.msra.mxu0 %v748
    %886 = vmatpush.bf16.msra.mxu0 %v747
    %887 = vmatpush.bf16.msra.mxu0 %v746
    %888 = vmatpush.bf16.msra.mxu0 %v745
    %889 = vmatpush.bf16.msra.mxu0 %v744
    %890 = vmatmul.bf16.gmra.mxu0 %v344
    %v891 = vpop.f32.mrf.mxu0
    %v892 = vadd.f32 %v484, %v891
    %v893 = vpop.f32.mrf.mxu0
    %v894 = vadd.f32 %v484, %v893
    %895 = vdwg.mxu0
    %896 = vmatpush.bf16.msra.mxu0 %v759
    %897 = vmatpush.bf16.msra.mxu0 %v758
    %898 = vmatpush.bf16.msra.mxu0 %v757
    %899 = vmatpush.bf16.msra.mxu0 %v756
    %900 = vmatpush.bf16.msra.mxu0 %v755
    %901 = vmatpush.bf16.msra.mxu0 %v754
    %902 = vmatpush.bf16.msra.mxu0 %v753
    %903 = vmatpush.bf16.msra.mxu0 %v752
    %904 = vmatmul.bf16.gmra.mxu0 %v345
    %v905 = vpop.f32.mrf.mxu0
    %v906 = vadd.f32 %v892, %v905
    %v907 = vpop.f32.mrf.mxu0
    %v908 = vadd.f32 %v894, %v907
    %909 = vdwg.mxu0
    %910 = vmatpush.bf16.msra.mxu0 %v767
    %911 = vmatpush.bf16.msra.mxu0 %v766
    %912 = vmatpush.bf16.msra.mxu0 %v765
    %913 = vmatpush.bf16.msra.mxu0 %v764
    %914 = vmatpush.bf16.msra.mxu0 %v763
    %915 = vmatpush.bf16.msra.mxu0 %v762
    %916 = vmatpush.bf16.msra.mxu0 %v761
    %917 = vmatpush.bf16.msra.mxu0 %v760
    %918 = vmatmul.bf16.gmra.mxu0 %v346
    %v919 = vpop.f32.mrf.mxu0
    %v920 = vadd.f32 %v906, %v919
    %v921 = vpop.f32.mrf.mxu0
    %v922 = vadd.f32 %v908, %v921
    %923 = vdwg.mxu0
    %924 = vmatpush.bf16.msra.mxu0 %v775
    %925 = vmatpush.bf16.msra.mxu0 %v774
    %926 = vmatpush.bf16.msra.mxu0 %v773
    %927 = vmatpush.bf16.msra.mxu0 %v772
    %928 = vmatpush.bf16.msra.mxu0 %v771
    %929 = vmatpush.bf16.msra.mxu0 %v770
    %930 = vmatpush.bf16.msra.mxu0 %v769
    %931 = vmatpush.bf16.msra.mxu0 %v768
    %932 = vmatmul.bf16.gmra.mxu0 %v347
    %v933 = vpop.f32.mrf.mxu0
    %v934 = vadd.f32 %v920, %v933
    %v935 = vpop.f32.mrf.mxu0
    %v936 = vadd.f32 %v922, %v935
    %937 = vdwg.mxu0
    %938 = vmatpush.bf16.msra.mxu0 %v783
    %939 = vmatpush.bf16.msra.mxu0 %v782
    %940 = vmatpush.bf16.msra.mxu0 %v781
    %941 = vmatpush.bf16.msra.mxu0 %v780
    %942 = vmatpush.bf16.msra.mxu0 %v779
    %943 = vmatpush.bf16.msra.mxu0 %v778
    %944 = vmatpush.bf16.msra.mxu0 %v777
    %945 = vmatpush.bf16.msra.mxu0 %v776
    %946 = vmatmul.bf16.gmra.mxu0 %v348
    %v947 = vpop.f32.mrf.mxu0
    %v948 = vadd.f32 %v934, %v947
    %v949 = vpop.f32.mrf.mxu0
    %v950 = vadd.f32 %v936, %v949
    %951 = vdwg.mxu0
    %952 = vmatpush.bf16.msra.mxu0 %v791
    %953 = vmatpush.bf16.msra.mxu0 %v790
    %954 = vmatpush.bf16.msra.mxu0 %v789
    %955 = vmatpush.bf16.msra.mxu0 %v788
    %956 = vmatpush.bf16.msra.mxu0 %v787
    %957 = vmatpush.bf16.msra.mxu0 %v786
    %958 = vmatpush.bf16.msra.mxu0 %v785
    %959 = vmatpush.bf16.msra.mxu0 %v784
    %960 = vmatmul.bf16.gmra.mxu0 %v349
    %v961 = vpop.f32.mrf.mxu0
    %v962 = vadd.f32 %v948, %v961
    %v963 = vpop.f32.mrf.mxu0
    %v964 = vadd.f32 %v950, %v963
    %965 = vdwg.mxu0
    %966 = vmatpush.bf16.msra.mxu0 %v799
    %967 = vmatpush.bf16.msra.mxu0 %v798
    %968 = vmatpush.bf16.msra.mxu0 %v797
    %969 = vmatpush.bf16.msra.mxu0 %v796
    %970 = vmatpush.bf16.msra.mxu0 %v795
    %971 = vmatpush.bf16.msra.mxu0 %v794
    %972 = vmatpush.bf16.msra.mxu0 %v793
    %973 = vmatpush.bf16.msra.mxu0 %v792
    %974 = vmatmul.bf16.gmra.mxu0 %v350
    %v975 = vpop.f32.mrf.mxu0
    %v976 = vadd.f32 %v962, %v975
    %v977 = vpop.f32.mrf.mxu0
    %v978 = vadd.f32 %v964, %v977
    %979 = vdwg.mxu0
    %980 = vmatpush.bf16.msra.mxu0 %v807
    %981 = vmatpush.bf16.msra.mxu0 %v806
    %982 = vmatpush.bf16.msra.mxu0 %v805
    %983 = vmatpush.bf16.msra.mxu0 %v804
    %984 = vmatpush.bf16.msra.mxu0 %v803
    %985 = vmatpush.bf16.msra.mxu0 %v802
    %986 = vmatpush.bf16.msra.mxu0 %v801
    %987 = vmatpush.bf16.msra.mxu0 %v800
    %988 = vmatmul.bf16.gmra.mxu0 %v351
    %v989 = vpop.f32.mrf.mxu0
    %v990 = vadd.f32 %v976, %v989
    %v991 = vpop.f32.mrf.mxu0
    %v992 = vadd.f32 %v978, %v991
    %993 = vdwg.mxu0
    %994 = vmatpush.bf16.msra.mxu0 0
    %995 = vmatpush.bf16.msra.mxu0 0
    %996 = vmatpush.bf16.msra.mxu0 0
    %997 = vmatpush.bf16.msra.mxu0 0
    %998 = vmatpush.bf16.msra.mxu0 0
    %999 = vmatpush.bf16.msra.mxu0 0
    %1000 = vmatpush.bf16.msra.mxu0 0
    %1001 = vmatpush.bf16.msra.mxu0 %v880
    %1002 = vmatmul.bf16.gmra.mxu0 %v874
    %v1003 = vpop.f32.mrf.mxu0
    %v1004 = vadd.f32 %v990, %v1003
    %v1005 = vpop.f32.mrf.mxu0
    %v1006 = vadd.f32 %v992, %v1005
    %1007 = vdwg.mxu0
    %vm1008 = vcmp.gt.f32.partialorder %v1004, 0.0
    %vm1009 = vcmp.gt.f32.partialorder %v1006, 0.0
    %v1010 = vmul.f32 %v1004, 0.01
    %v1011 = vmul.f32 %v1006, 0.01
    %v1012 = vsel %vm1008, %v1004, %v1010
    %v1013 = vsel %vm1009, %v1006, %v1011
    %v1014 = vld [vmem:[%s5] sm:$0x1]
    %v1015 = vld [vmem:[%s6] sm:$0x1]
    %1016 = vadd.xlane.f32.xlu0 %v1012
    %v1017 = vpop.xlane.xlu0 %1016
    %1018 = vadd.xlane.f32.xlu0 %v1013
    %v1019 = vpop.xlane.xlu0 %1018
    %v1020 = vrcp.pop 128.0
    %v1021 = vmul.f32 128.0, %v1020
    %v1022 = vsub.f32 1.0, %v1021
    %v1023 = vmul.f32 %v1020, %v1022
    %v1024 = vadd.f32 %v1020, %v1023
    %vm1025 = vweird.f32 %v1020
    %v1026 = vsel %vm1025, %v1020, %v1024
    %v1027 = vmul.f32 %v1017, %v1026
    %v1028 = vmul.f32 %v1019, %v1026
    %v1029 = vsub.f32 %v1012, %v1027
    %v1030 = vsub.f32 %v1013, %v1028
    %v1031 = vmul.f32 %v1029, %v1029
    %v1032 = vmul.f32 %v1030, %v1030
    %1033 = vadd.xlane.f32.xlu0 %v1031
    %v1034 = vpop.xlane.xlu0 %1033
    %1035 = vadd.xlane.f32.xlu0 %v1032
    %v1036 = vpop.xlane.xlu0 %1035
    %v1037 = vmul.f32 %v1034, %v1026
    %v1038 = vmul.f32 %v1036, %v1026
    %v1039 = vadd.f32 %v1037, 1e-06
    %v1040 = vadd.f32 %v1038, 1e-06
    %v1041 = vrsqrt.pop %v1039
    %v1042 = vmul.f32 %v1041, %v1039
    %v1043 = vmul.f32 %v1042, %v1041
    %v1044 = vmul.f32 0.5, %v1043
    %v1045 = vsub.f32 1.5, %v1044
    %v1046 = vmul.f32 %v1041, %v1045
    %vm1047 = vweird.f32 %v1039
    %vm1048 = vweird.f32 %v1041
    %vm1049 = vmor %vm1047, %vm1048
    %v1050 = vsel %vm1049, %v1041, %v1046
    %v1051 = vrsqrt.pop %v1040
    %v1052 = vmul.f32 %v1051, %v1040
    %v1053 = vmul.f32 %v1052, %v1051
    %v1054 = vmul.f32 0.5, %v1053
    %v1055 = vsub.f32 1.5, %v1054
    %v1056 = vmul.f32 %v1051, %v1055
    %vm1057 = vweird.f32 %v1040
    %vm1058 = vweird.f32 %v1051
    %vm1059 = vmor %vm1057, %vm1058
    %v1060 = vsel %vm1059, %v1051, %v1056
    %v1061 = vmul.f32 %v1029, %v1050
    %v1062 = vmul.f32 %v1030, %v1060
    %v1064 = vperm.slane %v1014, 0
    %v1066 = vmul.f32 %v1061, %v1064
    %v1067 = vmul.f32 %v1062, %v1064
    %v1069 = vperm.slane %v1015, 0
    %v1071 = vadd.f32 %v1066, %v1069
    %v1072 = vadd.f32 %v1067, %v1069
    %v1073 = vpack.c.bf16 %v1072, %v1071
    %v1074 = vld [vmem:[#allocation10] sm:$0xf]
    %v1075 = vld [vmem:[#allocation10 + $0x4] sm:$0xf]
    %v1076 = vld [vmem:[#allocation10 + $0x8] sm:$0xf]
    %v1077 = vld [vmem:[#allocation10 + $0xc] sm:$0xf]
    %v1078 = vld [vmem:[#allocation10 + $0x10] sm:$0xf]
    %v1079 = vld [vmem:[#allocation10 + $0x14] sm:$0xf]
    %v1080 = vld [vmem:[#allocation10 + $0x18] sm:$0xf]
    %v1081 = vld [vmem:[#allocation10 + $0x1c] sm:$0xf]
    %v1082 = vld [vmem:[#allocation10 + $0x20] sm:$0xf]
    %v1083 = vld [vmem:[#allocation10 + $0x24] sm:$0xf]
    %v1084 = vld [vmem:[#allocation10 + $0x28] sm:$0xf]
    %v1085 = vld [vmem:[#allocation10 + $0x2c] sm:$0xf]
    %v1086 = vld [vmem:[#allocation10 + $0x30] sm:$0xf]
    %v1087 = vld [vmem:[#allocation10 + $0x34] sm:$0xf]
    %v1088 = vld [vmem:[#allocation10 + $0x38] sm:$0xf]
    %v1089 = vld [vmem:[#allocation10 + $0x3c] sm:$0xf]
    %v1090 = vld [vmem:[%s8] sm:$0x1]
    %v1092 = vperm.slane %v1090, 0
    %v1110 = vunpack.c.l.b16 %v1074
    %v1111 = vunpack.c.l.b16 %v1075
    %v1112 = vunpack.c.l.b16 %v1076
    %v1113 = vunpack.c.l.b16 %v1077
    %v1114 = vunpack.c.l.b16 %v1078
    %v1115 = vunpack.c.l.b16 %v1079
    %v1116 = vunpack.c.l.b16 %v1080
    %v1117 = vunpack.c.l.b16 %v1081
    %v1118 = vunpack.c.l.b16 %v1082
    %v1119 = vunpack.c.l.b16 %v1083
    %v1120 = vunpack.c.l.b16 %v1084
    %v1121 = vunpack.c.l.b16 %v1085
    %v1122 = vunpack.c.l.b16 %v1086
    %v1123 = vunpack.c.l.b16 %v1087
    %v1124 = vunpack.c.l.b16 %v1088
    %v1125 = vunpack.c.l.b16 %v1089
    %v1126 = vpack.c.b16 %v1111, %v1110
    %v1127 = vpack.c.b16 %v1113, %v1112
    %v1128 = vpack.c.b16 %v1115, %v1114
    %v1129 = vpack.c.b16 %v1117, %v1116
    %v1130 = vpack.c.b16 %v1119, %v1118
    %v1131 = vpack.c.b16 %v1121, %v1120
    %v1132 = vpack.c.b16 %v1123, %v1122
    %v1133 = vpack.c.b16 %v1125, %v1124
    %1142 = vmatpush.bf16.msra.mxu0 %v1133
    %1143 = vmatpush.bf16.msra.mxu0 %v1132
    %1144 = vmatpush.bf16.msra.mxu0 %v1131
    %1145 = vmatpush.bf16.msra.mxu0 %v1130
    %1146 = vmatpush.bf16.msra.mxu0 %v1129
    %1147 = vmatpush.bf16.msra.mxu0 %v1128
    %1148 = vmatpush.bf16.msra.mxu0 %v1127
    %1149 = vmatpush.bf16.msra.mxu0 %v1126
    %1150 = vmatmul.bf16.gmra.mxu0 %v1073
    %v1151 = vpop.f32.mrf.mxu0
    %v1152 = vadd.f32 %v1092, %v1151
    %v1153 = vpop.f32.mrf.mxu0
    %v1154 = vadd.f32 %v1092, %v1153
    %1155 = vdwg.mxu0
    %vm1156 = vcmp.gt.f32.partialorder %v1152, 0.0
    %vm1157 = vcmp.gt.f32.partialorder %v1154, 0.0
    %v1158 = vmul.f32 %v1152, 0.01
    %v1159 = vmul.f32 %v1154, 0.01
    %v1160 = vsel %vm1156, %v1152, %v1158
    %v1161 = vsel %vm1157, %v1154, %v1159
    %v1162 = vld [vmem:[%s9] sm:$0x1]
    %v1163 = vld [vmem:[%s10] sm:$0x1]
    %1164 = vadd.xlane.f32.xlu0 %v1160
    %v1165 = vpop.xlane.xlu0 %1164
    %1166 = vadd.xlane.f32.xlu0 %v1161
    %v1167 = vpop.xlane.xlu0 %1166
    %v1168 = vmul.f32 %v1165, %v1026
    %v1169 = vmul.f32 %v1167, %v1026
    %v1170 = vsub.f32 %v1160, %v1168
    %v1171 = vsub.f32 %v1161, %v1169
    %v1172 = vmul.f32 %v1170, %v1170
    %v1173 = vmul.f32 %v1171, %v1171
    %1174 = vadd.xlane.f32.xlu0 %v1172
    %v1175 = vpop.xlane.xlu0 %1174
    %1176 = vadd.xlane.f32.xlu0 %v1173
    %v1177 = vpop.xlane.xlu0 %1176
    %v1178 = vmul.f32 %v1175, %v1026
    %v1179 = vmul.f32 %v1177, %v1026
    %v1180 = vadd.f32 %v1178, 1e-06
    %v1181 = vadd.f32 %v1179, 1e-06
    %v1182 = vrsqrt.pop %v1180
    %v1183 = vmul.f32 %v1182, %v1180
    %v1184 = vmul.f32 %v1183, %v1182
    %v1185 = vmul.f32 0.5, %v1184
    %v1186 = vsub.f32 1.5, %v1185
    %v1187 = vmul.f32 %v1182, %v1186
    %vm1188 = vweird.f32 %v1180
    %vm1189 = vweird.f32 %v1182
    %vm1190 = vmor %vm1188, %vm1189
    %v1191 = vsel %vm1190, %v1182, %v1187
    %v1192 = vrsqrt.pop %v1181
    %v1193 = vmul.f32 %v1192, %v1181
    %v1194 = vmul.f32 %v1193, %v1192
    %v1195 = vmul.f32 0.5, %v1194
    %v1196 = vsub.f32 1.5, %v1195
    %v1197 = vmul.f32 %v1192, %v1196
    %vm1198 = vweird.f32 %v1181
    %vm1199 = vweird.f32 %v1192
    %vm1200 = vmor %vm1198, %vm1199
    %v1201 = vsel %vm1200, %v1192, %v1197
    %v1202 = vmul.f32 %v1170, %v1191
    %v1203 = vmul.f32 %v1171, %v1201
    %v1205 = vperm.slane %v1162, 0
    %v1207 = vmul.f32 %v1202, %v1205
    %v1208 = vmul.f32 %v1203, %v1205
    %v1210 = vperm.slane %v1163, 0
    %v1212 = vadd.f32 %v1207, %v1210
    %v1213 = vadd.f32 %v1208, %v1210
    %1214 = vst [vmem:[#allocation11] sm:$0xff] %v1212
    %1215 = vst [vmem:[#allocation11 + $0x8] sm:$0xff] %v1213
    // Predicated region
    $region66: #{tpu_custom_call.1} parent=1 // pred_check
      _
    $region67: #{tpu_custom_call.1} parent=1 // pred_check_branch
      %1217 = sbr.rel (0) target = $region69
    $region68: #{tpu_custom_call.1} parent=1 // pred_region
      %1219 = vsyncadd [#allocation4], 0
      %s1220 = sshll.u32 [#allocation11], 4
      %s1221 = int_to_ptr.vmem [resolvable:$true] %s1220
      %s1222 = sshll.u32 %s11, 4
      %s1223 = int_to_ptr.hbm [resolvable:$true] %s1222
      %1228 = dma.vmem_to_hbm [thread:$0]  %s1221, 256, %s1223, [#allocation4], 128, 128, 8
    $region69: #{tpu_custom_call.1} parent=1 // pred_fallthru
      _
    // Predicated region
    $region70: #{tpu_custom_call.1} parent=1 // pred_check
      _
    $region71: #{tpu_custom_call.1} parent=1 // pred_check_branch
      %1230 = sbr.rel (0) target = $region73
    $region72: #{tpu_custom_call.1} parent=1 // pred_region
      %1232 = dma.done [#allocation4], 256
    $region73: #{tpu_custom_call.1} parent=1 // pred_fallthru
      _
    %1233 = vsyncpa [#allocation3], 1
    %1234 = vsyncpa [#allocation6], 1
    %1235 = vsyncpa [#allocation9], 1
    %1236 = vsyncpa [#allocation4], 1

</llo_original>
